<compile_context>
chip_gen: v7x
topology: tpu7x:2x2x1
jax: 0.10.0
libtpu: 0.0.40
codegen_flags: <defaults>
</compile_context>

<pallas_src>
import functools
import math

import jax
import jax.numpy as jnp
from jax.experimental import pallas as pl
from jax.experimental.pallas import tpu as pltpu

BN_EPS = 1e-5
LEAKY_SLOPE = 0.1
LANE = 128
SUBLANE = 8
NUM_TC = 2                       # v7x megacore; a size-2 parallel axis is harmless on v5e/v6e
VMEM_LIMIT = 48 * 1024 * 1024    # explicit limit: < 64 MiB physical on v7x, > v5e 16 MiB default
VMEM_BUDGET = 40 * 1024 * 1024   # target for the per-step double-buffered footprint


def _round_up(x, m):
    return (x + m - 1) // m * m


def conv_stats_kernel(patches_ref, w_ref, conv_ref, sum_ref, ssq_ref, *,
                      chunk, n_chunks):
    """Pass 1: im2col matmul per M-tile + per-channel sum / sumsq accumulation.

    patches_ref: (TM, 9*Cin)    bf16
    w_ref:       (9*Cin, Cpad)  bf16   (same block every grid step)
    conv_ref:    (TM, Cpad)     bf16   (conv output tile, stored bf16)
    sum_ref:     (1, 1, Cpad)   f32    (per-core resident accumulator)
    ssq_ref:     (1, 1, Cpad)   f32    (per-core resident accumulator)
    """
    @pl.when(pl.program_id(1) == 0)
    def _():
        sum_ref[...] = jnp.zeros_like(sum_ref)
        ssq_ref[...] = jnp.zeros_like(ssq_ref)

    w = w_ref[...]
    cpad = w_ref.shape[-1]

    def body(c, carry):
        s, sq = carry
        r0 = pl.multiple_of(c * chunk, chunk)
        # f32 MXU accumulation; only the stored intermediate is bf16.
        a = jnp.dot(patches_ref[pl.ds(r0, chunk), :], w,
                    preferred_element_type=jnp.float32)
        conv_ref[pl.ds(r0, chunk), :] = a.astype(conv_ref.dtype)
        # Cross-sublane reductions ride the XLU slot; chunking bounds the live
        # f32 acc so large TM tiles don't spill the vreg file.
        s = s + jnp.sum(a, axis=0, keepdims=True)
        sq = sq + jnp.sum(a * a, axis=0, keepdims=True)
        return s, sq

    zero = jnp.zeros((1, cpad), jnp.float32)
    s, sq = jax.lax.fori_loop(0, n_chunks, body, (zero, zero), unroll=True)
    sum_ref[...] += s.reshape(sum_ref.shape)
    ssq_ref[...] += sq.reshape(ssq_ref.shape)


def bn_lrelu_kernel(conv_ref, scale_ref, shift_ref, out_ref):
    """Pass 2: y = conv * scale + shift, then LeakyReLU(0.1). bf16 in, f32 math."""
    y = conv_ref[...].astype(jnp.float32) * scale_ref[...] + shift_ref[...]
    # maximum(y, 0.1*y) == LeakyReLU(0.1) and is a single VALU op.
    out_ref[...] = jnp.maximum(y, LEAKY_SLOPE * y)


def downsample_block(x_nchw, w_oihw, gamma, beta, *, tile_m=1024):
    """x_nchw: (N, Cin, H, W) f32; w_oihw: (Cout, Cin, 3, 3). Returns NCHW f32."""
    n, cin, h, w = x_nchw.shape
    cout = w_oihw.shape[0]
    # out spatial for k=3, stride=2, pad=1
    ho = (h - 1) // 2 + 1
    wo = (w - 1) // 2 + 1

    # ---- wrapper layout: NCHW -> NHWC (bf16!), pad=1, im2col over the 9 taps
    x = jnp.transpose(x_nchw, (0, 2, 3, 1)).astype(jnp.bfloat16)
    xp = jnp.pad(x, ((0, 0), (1, 1), (1, 1), (0, 0)))
    cols = [xp[:, kh:kh + 2 * ho:2, kw:kw + 2 * wo:2, :]
            for kh in range(3) for kw in range(3)]           # 9 x (N, Ho, Wo, Cin)
    k = 9 * cin
    m = n * ho * wo
    patches = jnp.concatenate(cols, axis=-1).reshape(m, k)   # bf16

    cpad = _round_up(cout, LANE)   # lane-dense (unmasked vst) output channels

    # ---- tile-size selection: biggest tile that fits the VMEM budget
    tm = min(_round_up(tile_m, SUBLANE), _round_up(m, SUBLANE))

    def footprint(tm_):
        p1 = (2 * tm_ * k * 2        # patches, double-buffered, bf16
              + 2 * k * cpad * 2     # weight, double-buffered, bf16
              + 2 * tm_ * cpad * 2)  # conv tile out, double-buffered, bf16
        p2 = (2 * tm_ * cpad * 2     # conv tile in, double-buffered, bf16
              + 2 * tm_ * cpad * 4)  # output tile, double-buffered, f32
        return max(p1, p2) + 4 * cpad * 4 * 2   # stats / scale / shift

    while tm > SUBLANE and footprint(tm) > VMEM_BUDGET:
        tm = _round_up(tm // 2, SUBLANE)

    grid_m = -(-m // tm)
    ncores = NUM_TC if grid_m >= NUM_TC else 1
    inner = -(-grid_m // ncores)
    mpad = ncores * inner * tm
    if mpad != m:
        # zero rows -> zero conv output -> zero contribution to sum/sumsq
        patches = jnp.pad(patches, ((0, mpad - m), (0, 0)))

    # in-kernel reduction chunk (multiple of 8, divides tm)
    chunk = math.gcd(tm, 256)
    n_chunks = tm // chunk

    # weight (Cout, Cin, 3, 3) -> (kh, kw, Cin, Cout) -> (9*Cin, Cpad), bf16
    w_mat = jnp.transpose(w_oihw, (2, 3, 1, 0)).reshape(k, cout)
    w_mat = jnp.pad(w_mat, ((0, 0), (0, cpad - cout))).astype(jnp.bfloat16)

    # ---- pass 1: bf16 conv tiles + per-core per-channel sum / sumsq
    conv_out, csum, cssq = pl.pallas_call(
        functools.partial(conv_stats_kernel, chunk=chunk, n_chunks=n_chunks),
        out_shape=(
            jax.ShapeDtypeStruct((mpad, cpad), jnp.bfloat16),
            jax.ShapeDtypeStruct((ncores, 1, cpad), jnp.float32),
            jax.ShapeDtypeStruct((ncores, 1, cpad), jnp.float32),
        ),
        grid=(ncores, inner),
        in_specs=[
            pl.BlockSpec((tm, k), lambda c, i: (c * inner + i, 0)),
            pl.BlockSpec((k, cpad), lambda c, i: (0, 0)),
        ],
        out_specs=(
            pl.BlockSpec((tm, cpad), lambda c, i: (c * inner + i, 0)),
            pl.BlockSpec((1, 1, cpad), lambda c, i: (c, 0, 0)),
            pl.BlockSpec((1, 1, cpad), lambda c, i: (c, 0, 0)),
        ),
        compiler_params=pltpu.CompilerParams(
            # leading axis shards across v7x's 2 TCs; inner axis holds the
            # per-core resident stat accumulators.
            dimension_semantics=("parallel", "arbitrary"),
            vmem_limit_bytes=VMEM_LIMIT),
        cost_estimate=pl.CostEstimate(
            flops=2 * mpad * k * cpad + 3 * mpad * cpad,
            transcendentals=0,
            bytes_accessed=(mpad * k * 2 + k * cpad * 2 + mpad * cpad * 2
                            + 2 * ncores * cpad * 4)),
    )(patches, w_mat)

    # ---- fold BN (training-mode, biased var over the true M rows) in tiny JAX
    mean = jnp.sum(csum, axis=0) / float(m)                    # (1, cpad)
    var = jnp.sum(cssq, axis=0) / float(m) - mean * mean
    inv = jax.lax.rsqrt(var + BN_EPS)
    gpad = jnp.pad(gamma.astype(jnp.float32), (0, cpad - cout)).reshape(1, cpad)
    bpad = jnp.pad(beta.astype(jnp.float32), (0, cpad - cout)).reshape(1, cpad)
    scale = gpad * inv
    shift = bpad - mean * scale

    # ---- pass 2: normalize + LeakyReLU, embarrassingly parallel over M tiles
    grid_total = mpad // tm
    out_flat = pl.pallas_call(
        bn_lrelu_kernel,
        out_shape=jax.ShapeDtypeStruct((mpad, cpad), jnp.float32),
        grid=(grid_total,),
        in_specs=[
            pl.BlockSpec((tm, cpad), lambda i: (i, 0)),
            pl.BlockSpec((1, cpad), lambda i: (0, 0)),
            pl.BlockSpec((1, cpad), lambda i: (0, 0)),
        ],
        out_specs=pl.BlockSpec((tm, cpad), lambda i: (i, 0)),
        compiler_params=pltpu.CompilerParams(
            dimension_semantics=("parallel",),
            vmem_limit_bytes=VMEM_LIMIT),
        cost_estimate=pl.CostEstimate(
            flops=3 * mpad * cpad,
            transcendentals=0,
            bytes_accessed=mpad * cpad * 2 + mpad * cpad * 4 + 4 * cpad * 4),
    )(conv_out, scale, shift)

    out = out_flat[:m, :cout].reshape(n, ho, wo, cout)
    return jnp.transpose(out, (0, 3, 1, 2))  # back to NCHW


def reference(x_nchw, w_oihw, gamma, beta):
    """Pure-JAX (f32) reference mirroring the PyTorch forward (training-mode BN)."""
    y = jax.lax.conv_general_dilated(
        x_nchw, w_oihw, window_strides=(2, 2), padding=((1, 1), (1, 1)),
        dimension_numbers=("NCHW", "OIHW", "NCHW"))
    mean = jnp.mean(y, axis=(0, 2, 3), keepdims=True)
    var = jnp.mean(jnp.square(y - mean), axis=(0, 2, 3), keepdims=True)
    yn = (y - mean) * jax.lax.rsqrt(var + BN_EPS)
    yn = yn * gamma.reshape(1, -1, 1, 1) + beta.reshape(1, -1, 1, 1)
    return jnp.where(yn >= 0, yn, LEAKY_SLOPE * yn)


if __name__ == "__main__":
    key = jax.random.PRNGKey(0)
    k_x, k_w, k_g, k_b = jax.random.split(key, 4)

    N, CIN, H, W, COUT = 2, 4, 16, 16, 8
    x = jax.random.normal(k_x, (N, CIN, H, W), dtype=jnp.float32)
    # Conv2d weight (Cout, Cin, 3, 3), deterministic init (kaiming-ish scale), no bias.
    w = jax.random.normal(k_w, (COUT, CIN, 3, 3), dtype=jnp.float32) / jnp.sqrt(CIN * 9.0)
    # BatchNorm2d affine params (non-trivial, deterministic).
    gamma = 1.0 + 0.1 * jax.random.normal(k_g, (COUT,), dtype=jnp.float32)
    beta = 0.1 * jax.random.normal(k_b, (COUT,), dtype=jnp.float32)

    out = jax.jit(downsample_block)(x, w, gamma, beta)
    out = jax.block_until_ready(out)
    assert out.shape == (N, COUT, H // 2, W // 2), out.shape

    ref = reference(x, w, gamma, beta)
    max_err = float(jnp.max(jnp.abs(out - ref)))
    # bf16 MXU operands + bf16 conv intermediate (f32 accumulation / BN math)
    # vs f32 reference -> loose tolerance.
    if max_err > 5e-2:
        raise AssertionError(f"kernel mismatch vs reference, max abs err = {max_err}")

    print("KERNEL_OK")
</pallas_src>

<mosaic_0001>
module attributes {stable_mosaic.version = 11 : i64} {
  func.func @conv_stats_kernel(%arg0: i32, %arg1: i32, %arg2: memref<128x36xbf16, #tpu.memory_space<vmem>>, %arg3: memref<36x128xbf16, #tpu.memory_space<vmem>>, %arg4: memref<128x128xbf16, #tpu.memory_space<vmem>>, %arg5: memref<1x1x128xf32, #tpu.memory_space<vmem>>, %arg6: memref<1x1x128xf32, #tpu.memory_space<vmem>>) attributes {dimension_semantics = [#tpu.dimension_semantics<parallel>, #tpu.dimension_semantics<arbitrary>], iteration_bounds = array<i64: 1, 1>, scalar_prefetch = 0 : i64, scratch_operands = 0 : i64, tpu.core_type = #tpu.core_type<tc>, window_params = [{transform_indices = @transform_0, window_bounds = array<i64: 128, 36>}, {pipeline_mode = #tpu.pipeline_mode<synchronous>, transform_indices = @transform_1, window_bounds = array<i64: 36, 128>}, {transform_indices = @transform_2, window_bounds = array<i64: 128, 128>}, {transform_indices = @transform_3, window_bounds = array<i64: 1, 1, 128>}, {transform_indices = @transform_4, window_bounds = array<i64: 1, 1, 128>}]} {
    %c0_i32 = arith.constant 0 : i32
    %0 = arith.cmpi eq, %arg1, %c0_i32 : i32
    %1 = arith.extui %0 : i1 to i32
    %c0_i32_0 = arith.constant 0 : i32
    %2 = arith.cmpi ne, %1, %c0_i32_0 : i32
    scf.if %2 {
      %cst_20 = arith.constant 0.000000e+00 : f32
      %28 = vector.broadcast %cst_20 : f32 to vector<1x1x128xf32>
      %c0_21 = arith.constant 0 : index
      %c0_22 = arith.constant 0 : index
      %c0_23 = arith.constant 0 : index
      %29 = vector.load %arg5[%c0_21, %c0_22, %c0_23] : memref<1x1x128xf32, #tpu.memory_space<vmem>>, vector<1x1x128xf32>
      tpu.vector_store %arg5[%c0_21, %c0_22, %c0_23], %28 {strides = array<i32>} : memref<1x1x128xf32, #tpu.memory_space<vmem>>, vector<1x1x128xf32>,
      %cst_24 = arith.constant 0.000000e+00 : f32
      %30 = vector.broadcast %cst_24 : f32 to vector<1x1x128xf32>
      %c0_25 = arith.constant 0 : index
      %c0_26 = arith.constant 0 : index
      %c0_27 = arith.constant 0 : index
      %31 = vector.load %arg6[%c0_25, %c0_26, %c0_27] : memref<1x1x128xf32, #tpu.memory_space<vmem>>, vector<1x1x128xf32>
      tpu.vector_store %arg6[%c0_25, %c0_26, %c0_27], %30 {strides = array<i32>} : memref<1x1x128xf32, #tpu.memory_space<vmem>>, vector<1x1x128xf32>,
    } else {
    }
    %c0 = arith.constant 0 : index
    %c0_1 = arith.constant 0 : index
    %3 = vector.load %arg3[%c0, %c0_1] : memref<36x128xbf16, #tpu.memory_space<vmem>>, vector<36x128xbf16>
    %cst = arith.constant 0.000000e+00 : f32
    %4 = vector.broadcast %cst : f32 to vector<1x128xf32>
    %c0_i32_2 = arith.constant 0 : i32
    %c128_i32 = arith.constant 128 : i32
    %5 = arith.muli %c0_i32_2, %c128_i32 : i32
    %6 = tpu.assume_multiple %5, 128 : i32
    %7 = arith.index_cast %6 : i32 to index
    %c0_3 = arith.constant 0 : index
    %8 = vector.load %arg2[%7, %c0_3] : memref<128x36xbf16, #tpu.memory_space<vmem>>, vector<128x36xbf16>
    %cst_4 = arith.constant dense<0.000000e+00> : vector<128x128xf32>
    %9 = tpu.matmul %8, %3, %cst_4 {dimension_numbers = #tpu.dot_dimension_numbers<[1], [0], [0], [1], [0, 0, 1, 1], [], []>} : vector<128x36xbf16>, vector<36x128xbf16>, vector<128x128xf32> -> vector<128x128xf32>
    %10 = arith.truncf %9 : vector<128x128xf32> to vector<128x128xbf16>
    %11 = arith.index_cast %6 : i32 to index
    %c0_5 = arith.constant 0 : index
    %12 = vector.load %arg4[%11, %c0_5] : memref<128x128xbf16, #tpu.memory_space<vmem>>, vector<128x128xbf16>
    tpu.vector_store %arg4[%11, %c0_5], %10 {strides = array<i32>} : memref<128x128xbf16, #tpu.memory_space<vmem>>, vector<128x128xbf16>,
    %cst_6 = arith.constant dense<0.000000e+00> : vector<128xf32>
    %13 = vector.multi_reduction <add>, %9, %cst_6 [0] : vector<128x128xf32> to vector<128xf32>
    %14 = vector.shape_cast %13 : vector<128xf32> to vector<1x128xf32>
    %15 = arith.addf %4, %14 : vector<1x128xf32>
    %16 = arith.mulf %9, %9 : vector<128x128xf32>
    %cst_7 = arith.constant dense<0.000000e+00> : vector<128xf32>
    %17 = vector.multi_reduction <add>, %16, %cst_7 [0] : vector<128x128xf32> to vector<128xf32>
    %18 = vector.shape_cast %17 : vector<128xf32> to vector<1x128xf32>
    %19 = arith.addf %4, %18 : vector<1x128xf32>
    %c1_i32 = arith.constant 1 : i32
    %c0_8 = arith.constant 0 : index
    %c0_9 = arith.constant 0 : index
    %c0_10 = arith.constant 0 : index
    %20 = vector.load %arg5[%c0_8, %c0_9, %c0_10] : memref<1x1x128xf32, #tpu.memory_space<vmem>>, vector<1x1x128xf32>
    %21 = vector.shape_cast %15 : vector<1x128xf32> to vector<1x1x128xf32>
    %22 = arith.addf %20, %21 : vector<1x1x128xf32>
    %c0_11 = arith.constant 0 : index
    %c0_12 = arith.constant 0 : index
    %c0_13 = arith.constant 0 : index
    %23 = vector.load %arg5[%c0_11, %c0_12, %c0_13] : memref<1x1x128xf32, #tpu.memory_space<vmem>>, vector<1x1x128xf32>
    tpu.vector_store %arg5[%c0_11, %c0_12, %c0_13], %22 {strides = array<i32>} : memref<1x1x128xf32, #tpu.memory_space<vmem>>, vector<1x1x128xf32>,
    %c0_14 = arith.constant 0 : index
    %c0_15 = arith.constant 0 : index
    %c0_16 = arith.constant 0 : index
    %24 = vector.load %arg6[%c0_14, %c0_15, %c0_16] : memref<1x1x128xf32, #tpu.memory_space<vmem>>, vector<1x1x128xf32>
    %25 = vector.shape_cast %19 : vector<1x128xf32> to vector<1x1x128xf32>
    %26 = arith.addf %24, %25 : vector<1x1x128xf32>
    %c0_17 = arith.constant 0 : index
    %c0_18 = arith.constant 0 : index
    %c0_19 = arith.constant 0 : index
    %27 = vector.load %arg6[%c0_17, %c0_18, %c0_19] : memref<1x1x128xf32, #tpu.memory_space<vmem>>, vector<1x1x128xf32>
    tpu.vector_store %arg6[%c0_17, %c0_18, %c0_19], %26 {strides = array<i32>} : memref<1x1x128xf32, #tpu.memory_space<vmem>>, vector<1x1x128xf32>,
    return
  }
  func.func @transform_0(%arg0: i32, %arg1: i32) -> (i32, i32) {
    %c1_i32 = arith.constant 1 : i32
    %0 = arith.muli %arg0, %c1_i32 : i32
    %1 = arith.addi %0, %arg1 : i32
    %c0_i32 = arith.constant 0 : i32
    %c0_i32_0 = arith.constant 0 : i32
    return %1, %c0_i32 : i32, i32
  }
  func.func @transform_1(%arg0: i32, %arg1: i32) -> (i32, i32) {
    %c0_i32 = arith.constant 0 : i32
    %c0_i32_0 = arith.constant 0 : i32
    %c0_i32_1 = arith.constant 0 : i32
    return %c0_i32, %c0_i32_0 : i32, i32
  }
  func.func @transform_2(%arg0: i32, %arg1: i32) -> (i32, i32) {
    %c1_i32 = arith.constant 1 : i32
    %0 = arith.muli %arg0, %c1_i32 : i32
    %1 = arith.addi %0, %arg1 : i32
    %c0_i32 = arith.constant 0 : i32
    %c0_i32_0 = arith.constant 0 : i32
    return %1, %c0_i32 : i32, i32
  }
  func.func @transform_3(%arg0: i32, %arg1: i32) -> (i32, i32, i32) {
    %c0_i32 = arith.constant 0 : i32
    %c0_i32_0 = arith.constant 0 : i32
    %c0_i32_1 = arith.constant 0 : i32
    return %arg0, %c0_i32, %c0_i32_0 : i32, i32, i32
  }
  func.func @transform_4(%arg0: i32, %arg1: i32) -> (i32, i32, i32) {
    %c0_i32 = arith.constant 0 : i32
    %c0_i32_0 = arith.constant 0 : i32
    %c0_i32_1 = arith.constant 0 : i32
    return %arg0, %c0_i32, %c0_i32_0 : i32, i32, i32
  }
}

module attributes {stable_mosaic.version = 11 : i64} {
  func.func @bn_lrelu_kernel(%arg0: i32, %arg1: memref<128x128xbf16, #tpu.memory_space<vmem>>, %arg2: memref<1x128xf32, #tpu.memory_space<vmem>>, %arg3: memref<1x128xf32, #tpu.memory_space<vmem>>, %arg4: memref<128x128xf32, #tpu.memory_space<vmem>>) attributes {dimension_semantics = [#tpu.dimension_semantics<parallel>], iteration_bounds = array<i64: 1>, scalar_prefetch = 0 : i64, scratch_operands = 0 : i64, tpu.core_type = #tpu.core_type<tc>, window_params = [{transform_indices = @transform_0, window_bounds = array<i64: 128, 128>}, {pipeline_mode = #tpu.pipeline_mode<synchronous>, transform_indices = @transform_1, window_bounds = array<i64: 1, 128>}, {pipeline_mode = #tpu.pipeline_mode<synchronous>, transform_indices = @transform_2, window_bounds = array<i64: 1, 128>}, {transform_indices = @transform_3, window_bounds = array<i64: 128, 128>}]} {
    %c0 = arith.constant 0 : index
    %c0_0 = arith.constant 0 : index
    %0 = vector.load %arg1[%c0, %c0_0] : memref<128x128xbf16, #tpu.memory_space<vmem>>, vector<128x128xbf16>
    %1 = arith.extf %0 : vector<128x128xbf16> to vector<128x128xf32>
    %c0_1 = arith.constant 0 : index
    %c0_2 = arith.constant 0 : index
    %2 = vector.load %arg2[%c0_1, %c0_2] : memref<1x128xf32, #tpu.memory_space<vmem>>, vector<1x128xf32>
    %3 = vector.broadcast %2 : vector<1x128xf32> to vector<128x128xf32>
    %4 = arith.mulf %1, %3 : vector<128x128xf32>
    %c0_3 = arith.constant 0 : index
    %c0_4 = arith.constant 0 : index
    %5 = vector.load %arg3[%c0_3, %c0_4] : memref<1x128xf32, #tpu.memory_space<vmem>>, vector<1x128xf32>
    %6 = vector.broadcast %5 : vector<1x128xf32> to vector<128x128xf32>
    %7 = arith.addf %4, %6 : vector<128x128xf32>
    %cst = arith.constant 1.000000e-01 : f32
    %8 = vector.broadcast %cst : f32 to vector<128x128xf32>
    %9 = arith.mulf %8, %7 : vector<128x128xf32>
    %10 = arith.maximumf %7, %9 : vector<128x128xf32>
    %c0_5 = arith.constant 0 : index
    %c0_6 = arith.constant 0 : index
    %11 = vector.load %arg4[%c0_5, %c0_6] : memref<128x128xf32, #tpu.memory_space<vmem>>, vector<128x128xf32>
    tpu.vector_store %arg4[%c0_5, %c0_6], %10 {strides = array<i32>} : memref<128x128xf32, #tpu.memory_space<vmem>>, vector<128x128xf32>,
    return
  }
  func.func @transform_0(%arg0: i32) -> (i32, i32) {
    %c0_i32 = arith.constant 0 : i32
    %c0_i32_0 = arith.constant 0 : i32
    return %arg0, %c0_i32 : i32, i32
  }
  func.func @transform_1(%arg0: i32) -> (i32, i32) {
    %c0_i32 = arith.constant 0 : i32
    %c0_i32_0 = arith.constant 0 : i32
    %c0_i32_1 = arith.constant 0 : i32
    return %c0_i32, %c0_i32_0 : i32, i32
  }
  func.func @transform_2(%arg0: i32) -> (i32, i32) {
    %c0_i32 = arith.constant 0 : i32
    %c0_i32_0 = arith.constant 0 : i32
    %c0_i32_1 = arith.constant 0 : i32
    return %c0_i32, %c0_i32_0 : i32, i32
  }
  func.func @transform_3(%arg0: i32) -> (i32, i32) {
    %c0_i32 = arith.constant 0 : i32
    %c0_i32_0 = arith.constant 0 : i32
    return %arg0, %c0_i32 : i32, i32
  }
}

</mosaic_0001>

<llo_original>
// kernel: downsample_block.3
$region0: #{downsample_block.3}
  #allocation0 [shape = 'u32[]', space=smem, size = 0x4, offset = 0x4, fixed_abs, tag = 'smem constant byte address 0x4 - core index']
  #allocation1 [shape = 'u32[144,128]{1,0:T(1,128)}', space=vmem, size = 0x12000, scoped, tag = 'internal scratch']
  %s0 = inlined_call_operand.vmem [shape: bf16[128,128], index: 0, kind: input, shape index: {}]
  %s1 = inlined_call_operand.vmem [shape: f32[1,128], index: 1, kind: input, shape index: {}]
  %s2 = inlined_call_operand.vmem [shape: f32[1,128], index: 2, kind: input, shape index: {}]
  %s3 = inlined_call_operand.vmem [shape: f32[128,128], index: 3, kind: output, shape index: {}]
  %s4 = sld [smem:[#allocation0]]
  $region22: #{downsample_block.3} parent=0
    _
  %s6 = ssub.s32 1, %s4
  %s7 = scalar_select 0, %s6, %s4
  // Predicated region
  $region2: #{downsample_block.3} parent=0 // pred_check
    _
  $region3: #{downsample_block.3} parent=0 // pred_check_branch
    %9 = sbr.rel (0) target = $region5
  $region4: #{downsample_block.3} parent=0 // pred_region
    _
  $region5: #{downsample_block.3} parent=0 // pred_fallthru
    _
  // Predicated region
  $region6: #{downsample_block.3} parent=0 // pred_check
    _
  $region7: #{downsample_block.3} parent=0 // pred_check_branch
    %11 = sbr.rel (0) target = $region9
  $region8: #{downsample_block.3} parent=0 // pred_region
    _
  $region9: #{downsample_block.3} parent=0 // pred_fallthru
    _
  // Predicated region
  $region10: #{downsample_block.3} parent=0 // pred_check
    _
  $region11: #{downsample_block.3} parent=0 // pred_check_branch
    %13 = sbr.rel (0) target = $region13
  $region12: #{downsample_block.3} parent=0 // pred_region
    _
  $region13: #{downsample_block.3} parent=0 // pred_fallthru
    _
  %v14 = vld [vmem:[%s0] sm:$0xf]
  %v15 = vld [vmem:[%s0 + $0x4] sm:$0xf]
  %v16 = vld [vmem:[%s0 + $0x8] sm:$0xf]
  %v17 = vld [vmem:[%s0 + $0xc] sm:$0xf]
  %v18 = vld [vmem:[%s0 + $0x10] sm:$0xf]
  %v19 = vld [vmem:[%s0 + $0x14] sm:$0xf]
  %v20 = vld [vmem:[%s0 + $0x18] sm:$0xf]
  %v21 = vld [vmem:[%s0 + $0x1c] sm:$0xf]
  %v22 = vld [vmem:[%s0 + $0x20] sm:$0xf]
  %v23 = vld [vmem:[%s0 + $0x24] sm:$0xf]
  %v24 = vld [vmem:[%s0 + $0x28] sm:$0xf]
  %v25 = vld [vmem:[%s0 + $0x2c] sm:$0xf]
  %v26 = vld [vmem:[%s0 + $0x30] sm:$0xf]
  %v27 = vld [vmem:[%s0 + $0x34] sm:$0xf]
  %v28 = vld [vmem:[%s0 + $0x38] sm:$0xf]
  %v29 = vld [vmem:[%s0 + $0x3c] sm:$0xf]
  %v30 = vunpack.c.l.bf16 %v14
  %v31 = vunpack.c.l.bf16 %v15
  %v32 = vunpack.c.l.bf16 %v16
  %v33 = vunpack.c.l.bf16 %v17
  %v34 = vunpack.c.l.bf16 %v18
  %v35 = vunpack.c.l.bf16 %v19
  %v36 = vunpack.c.l.bf16 %v20
  %v37 = vunpack.c.l.bf16 %v21
  %v38 = vunpack.c.l.bf16 %v22
  %v39 = vunpack.c.l.bf16 %v23
  %v40 = vunpack.c.l.bf16 %v24
  %v41 = vunpack.c.l.bf16 %v25
  %v42 = vunpack.c.l.bf16 %v26
  %v43 = vunpack.c.l.bf16 %v27
  %v44 = vunpack.c.l.bf16 %v28
  %v45 = vunpack.c.l.bf16 %v29
  %v46 = vld [vmem:[%s1] sm:$0x1]
  %v48 = vlaneseq
  %v49 = vshrl.u32 %v48, 7
  %v50 = vsub.s32 0, %v49
  %v51 = vrot.slane %v46, %v50
  %v53 = vmul.f32 %v30, %v51
  %v54 = vmul.f32 %v31, %v51
  %v55 = vmul.f32 %v32, %v51
  %v56 = vmul.f32 %v33, %v51
  %v57 = vmul.f32 %v34, %v51
  %v58 = vmul.f32 %v35, %v51
  %v59 = vmul.f32 %v36, %v51
  %v60 = vmul.f32 %v37, %v51
  %v61 = vmul.f32 %v38, %v51
  %v62 = vmul.f32 %v39, %v51
  %v63 = vmul.f32 %v40, %v51
  %v64 = vmul.f32 %v41, %v51
  %v65 = vmul.f32 %v42, %v51
  %v66 = vmul.f32 %v43, %v51
  %v67 = vmul.f32 %v44, %v51
  %v68 = vmul.f32 %v45, %v51
  %v69 = vld [vmem:[%s2] sm:$0x1]
  %v71 = vlaneseq
  %v72 = vshrl.u32 %v71, 7
  %v73 = vsub.s32 0, %v72
  %v74 = vrot.slane %v69, %v73
  %v76 = vadd.f32 %v53, %v74
  %v77 = vadd.f32 %v54, %v74
  %v78 = vadd.f32 %v55, %v74
  %v79 = vadd.f32 %v56, %v74
  %v80 = vadd.f32 %v57, %v74
  %v81 = vadd.f32 %v58, %v74
  %v82 = vadd.f32 %v59, %v74
  %v83 = vadd.f32 %v60, %v74
  %v84 = vadd.f32 %v61, %v74
  %v85 = vadd.f32 %v62, %v74
  %v86 = vadd.f32 %v63, %v74
  %v87 = vadd.f32 %v64, %v74
  %v88 = vadd.f32 %v65, %v74
  %v89 = vadd.f32 %v66, %v74
  %v90 = vadd.f32 %v67, %v74
  %v91 = vadd.f32 %v68, %v74
  %v92 = vmul.f32 %v76, 0.1
  %v93 = vmul.f32 %v77, 0.1
  %v94 = vmul.f32 %v78, 0.1
  %v95 = vmul.f32 %v79, 0.1
  %v96 = vmul.f32 %v80, 0.1
  %v97 = vmul.f32 %v81, 0.1
  %v98 = vmul.f32 %v82, 0.1
  %v99 = vmul.f32 %v83, 0.1
  %v100 = vmul.f32 %v84, 0.1
  %v101 = vmul.f32 %v85, 0.1
  %v102 = vmul.f32 %v86, 0.1
  %v103 = vmul.f32 %v87, 0.1
  %v104 = vmul.f32 %v88, 0.1
  %v105 = vmul.f32 %v89, 0.1
  %v106 = vmul.f32 %v90, 0.1
  %v107 = vmul.f32 %v91, 0.1
  %v108 = vmax.f32 %v76, %v92
  %v109 = vmax.f32 %v77, %v93
  %v110 = vmax.f32 %v78, %v94
  %v111 = vmax.f32 %v79, %v95
  %v112 = vmax.f32 %v80, %v96
  %v113 = vmax.f32 %v81, %v97
  %v114 = vmax.f32 %v82, %v98
  %v115 = vmax.f32 %v83, %v99
  %v116 = vmax.f32 %v84, %v100
  %v117 = vmax.f32 %v85, %v101
  %v118 = vmax.f32 %v86, %v102
  %v119 = vmax.f32 %v87, %v103
  %v120 = vmax.f32 %v88, %v104
  %v121 = vmax.f32 %v89, %v105
  %v122 = vmax.f32 %v90, %v106
  %v123 = vmax.f32 %v91, %v107
  %124 = vst [vmem:[%s3] sm:$0xff] %v108
  %125 = vst [vmem:[%s3 + $0x8] sm:$0xff] %v109
  %126 = vst [vmem:[%s3 + $0x10] sm:$0xff] %v110
  %127 = vst [vmem:[%s3 + $0x18] sm:$0xff] %v111
  %128 = vst [vmem:[%s3 + $0x20] sm:$0xff] %v112
  %129 = vst [vmem:[%s3 + $0x28] sm:$0xff] %v113
  %130 = vst [vmem:[%s3 + $0x30] sm:$0xff] %v114
  %131 = vst [vmem:[%s3 + $0x38] sm:$0xff] %v115
  %132 = vst [vmem:[%s3 + $0x40] sm:$0xff] %v116
  %133 = vst [vmem:[%s3 + $0x48] sm:$0xff] %v117
  %134 = vst [vmem:[%s3 + $0x50] sm:$0xff] %v118
  %135 = vst [vmem:[%s3 + $0x58] sm:$0xff] %v119
  %136 = vst [vmem:[%s3 + $0x60] sm:$0xff] %v120
  %137 = vst [vmem:[%s3 + $0x68] sm:$0xff] %v121
  %138 = vst [vmem:[%s3 + $0x70] sm:$0xff] %v122
  %139 = vst [vmem:[%s3 + $0x78] sm:$0xff] %v123
  // Predicated region
  $region14: #{downsample_block.3} parent=0 // pred_check
    _
  $region15: #{downsample_block.3} parent=0 // pred_check_branch
    %141 = sbr.rel (0) target = $region17
  $region16: #{downsample_block.3} parent=0 // pred_region
    _
  $region17: #{downsample_block.3} parent=0 // pred_fallthru
    _
  // Predicated region
  $region18: #{downsample_block.3} parent=0 // pred_check
    _
  $region19: #{downsample_block.3} parent=0 // pred_check_branch
    %143 = sbr.rel (0) target = $region21
  $region20: #{downsample_block.3} parent=0 // pred_region
    _
  $region21: #{downsample_block.3} parent=0 // pred_fallthru
    _

// kernel: downsample_block.2
$region0: #{downsample_block.2}
  #allocation0 [shape = 'u32[]', space=smem, size = 0x4, offset = 0x4, fixed_abs, tag = 'smem constant byte address 0x4 - core index']
  #allocation1 [shape = 'u32[144,128]{1,0:T(1,128)}', space=vmem, size = 0x12000, scoped, tag = 'internal scratch']
  %s0 = inlined_call_operand.vmem [shape: bf16[128,36], index: 0, kind: input, shape index: {}]
  %s1 = inlined_call_operand.vmem [shape: bf16[36,128], index: 1, kind: input, shape index: {}]
  %s2 = inlined_call_operand.vmem [shape: bf16[128,128], index: 2, kind: output, shape index: {0}]
  %s3 = inlined_call_operand.vmem [shape: f32[1,1,128], index: 3, kind: output, shape index: {1}]
  %s4 = inlined_call_operand.vmem [shape: f32[1,1,128], index: 4, kind: output, shape index: {2}]
  %5 = xla_tuple %s2, %s3, %s4
  %s6 = sld [smem:[#allocation0]]
  $region38: #{downsample_block.2} parent=0
    _
  %s8 = ssub.s32 1, %s6
  %s9 = scalar_select 0, %s8, %s6
  // Predicated region
  $region2: #{downsample_block.2} parent=0 // pred_check
    _
  $region3: #{downsample_block.2} parent=0 // pred_check_branch
    %11 = sbr.rel (0) target = $region5
  $region4: #{downsample_block.2} parent=0 // pred_region
    %s12 = sadd.s32 0, 0
    %s13 = smul.u32 16, %s12
    %p14 = scmp.lt.s32.totalorder %s13, 15
    %s15 = scalar_select %p14, %s13, 15
    %s16 = smul.addr %s15, 4
    %s17 = scalar_lea.vmem %s0, %s16
    %s18 = sadd.s32 0, 0
    %s19 = smul.u32 16, %s18
  $region5: #{downsample_block.2} parent=0 // pred_fallthru
    _
  // Predicated region
  $region6: #{downsample_block.2} parent=0 // pred_check
    _
  $region7: #{downsample_block.2} parent=0 // pred_check_branch
    %21 = sbr.rel (0) target = $region9
  $region8: #{downsample_block.2} parent=0 // pred_region
    _
  $region9: #{downsample_block.2} parent=0 // pred_fallthru
    _
  %s22 = sadd.s32 0, 0
  %s23 = smul.u32 16, %s22
  %p24 = scmp.lt.s32.totalorder %s23, 15
  %s25 = scalar_select %p24, %s23, 15
  %s26 = smul.addr %s25, 4
  %s27 = scalar_lea.vmem %s0, %s26
  %s28 = sadd.s32 0, 0
  %s29 = smul.u32 16, %s28
  %p30 = scmp.lt.s32.totalorder %s29, 15
  %s31 = scalar_select %p30, %s29, 15
  %s32 = smul.addr %s31, 4
  %s33 = scalar_lea.vmem %s2, %s32
  %s34 = sadd.s32 0, 0
  %s35 = smul.u32 16, %s34
  %p36 = scmp.lt.s32.totalorder %s35, 15
  %s37 = scalar_select %p36, %s35, 15
  %s38 = smul.addr %s37, 4
  %s39 = scalar_lea.vmem %s0, %s38
  %s40 = sadd.s32 0, 0
  %s41 = smul.u32 16, %s40
  %s42 = sadd.s32 0, 0
  %s43 = smul.u32 16, %s42
  %p44 = scmp.lt.s32.totalorder %s43, 15
  %s45 = scalar_select %p44, %s43, 15
  %s46 = smul.addr %s45, 4
  %s47 = scalar_lea.vmem %s2, %s46
  %s48 = sadd.s32 0, 0
  %s49 = smul.u32 16, %s48
  %p51 = scmp.eq.s32.totalorder 0, 0
  // Predicated region
  $region10: #{downsample_block.2} parent=0 // pred_check
    %p52 = pneg %p51
  $region11: #{downsample_block.2} parent=0 // pred_check_branch
    %54 = sbr.rel (%p52) target = $region13
  $region12: #{downsample_block.2} parent=0 // pred_region
    %55 = vst [vmem:[%s3] sm:$0x1] 0.0
    %56 = vst [vmem:[%s4] sm:$0x1] 0.0
  $region13: #{downsample_block.2} parent=0 // pred_fallthru
    _
  %v57 = vld [vmem:[%s1] sm:$0xf]
  %v58 = vld [vmem:[%s1 + $0x4] sm:$0xf]
  %v59 = vld [vmem:[%s1 + $0x8] sm:$0xf]
  %v60 = vld [vmem:[%s1 + $0xc] sm:$0xf]
  %v61 = vld [vmem:[%s1 + $0x10] sm:$0x3]
  %v62 = vld [vmem:[%s39] sm:$0xf]
  %v63 = vld [vmem:[%s39 + $0x4] sm:$0xf]
  %v64 = vld [vmem:[%s39 + $0x8] sm:$0xf]
  %v65 = vld [vmem:[%s39 + $0xc] sm:$0xf]
  %v66 = vld [vmem:[%s39 + $0x10] sm:$0xf]
  %v67 = vld [vmem:[%s39 + $0x14] sm:$0xf]
  %v68 = vld [vmem:[%s39 + $0x18] sm:$0xf]
  %v69 = vld [vmem:[%s39 + $0x1c] sm:$0xf]
  %v70 = vld [vmem:[%s39 + $0x20] sm:$0xf]
  %v71 = vld [vmem:[%s39 + $0x24] sm:$0xf]
  %v72 = vld [vmem:[%s39 + $0x28] sm:$0xf]
  %v73 = vld [vmem:[%s39 + $0x2c] sm:$0xf]
  %v74 = vld [vmem:[%s39 + $0x30] sm:$0xf]
  %v75 = vld [vmem:[%s39 + $0x34] sm:$0xf]
  %v76 = vld [vmem:[%s39 + $0x38] sm:$0xf]
  %v77 = vld [vmem:[%s39 + $0x3c] sm:$0xf]
  %v94 = vunpack.c.l.b16 %v62
  %v95 = vunpack.c.l.b16 %v63
  %v96 = vunpack.c.l.b16 %v64
  %v97 = vunpack.c.l.b16 %v65
  %v98 = vunpack.c.l.b16 %v66
  %v99 = vunpack.c.l.b16 %v67
  %v100 = vunpack.c.l.b16 %v68
  %v101 = vunpack.c.l.b16 %v69
  %v102 = vunpack.c.l.b16 %v70
  %v103 = vunpack.c.l.b16 %v71
  %v104 = vunpack.c.l.b16 %v72
  %v105 = vunpack.c.l.b16 %v73
  %v106 = vunpack.c.l.b16 %v74
  %v107 = vunpack.c.l.b16 %v75
  %v108 = vunpack.c.l.b16 %v76
  %v109 = vunpack.c.l.b16 %v77
  %v110 = vpack.c.b16 %v95, %v94
  %v111 = vpack.c.b16 %v97, %v96
  %v112 = vpack.c.b16 %v99, %v98
  %v113 = vpack.c.b16 %v101, %v100
  %v114 = vpack.c.b16 %v103, %v102
  %v115 = vpack.c.b16 %v105, %v104
  %v116 = vpack.c.b16 %v107, %v106
  %v117 = vpack.c.b16 %v109, %v108
  %v123 = vunpack.c.l.b16 %v57
  %v124 = vunpack.c.l.b16 %v58
  %v125 = vunpack.c.l.b16 %v59
  %v126 = vunpack.c.l.b16 %v60
  %v127 = vunpack.c.l.b16 %v61
  %v128 = vpack.c.b16 %v124, %v123
  %v129 = vpack.c.b16 %v126, %v125
  %v130 = vpack.c.b16 %v127, %v127
  %vm133 = vcmask 293888
  %v135 = vsel %vm133, %v110, 0
  %v138 = vsel %vm133, %v111, 0
  %v141 = vsel %vm133, %v112, 0
  %v144 = vsel %vm133, %v113, 0
  %v147 = vsel %vm133, %v114, 0
  %v150 = vsel %vm133, %v115, 0
  %v153 = vsel %vm133, %v116, 0
  %v156 = vsel %vm133, %v117, 0
  %vm158 = vcmask 1041408
  %v160 = vsel %vm158, %v130, 0
  %162 = vmatprep.subr.bf16.mxu0 0
  %163 = vmatpush1.bf16.msra.mxu0 %v128
  %164 = vmatprep.subr.bf16.mxu0 0
  %165 = vmatpush1.bf16.msra.mxu0 %v129
  %166 = vmatprep.subr.bf16.mxu0 0
  %167 = vmatpush1.bf16.msra.mxu0 %v160
  %168 = vmatprep.subr.bf16.mxu0 0
  %169 = vmatpush1.bf16.msra.mxu0 0
  %170 = vmatprep.subr.bf16.mxu0 0
  %171 = vmatpush1.bf16.msra.mxu0 0
  %172 = vmatprep.subr.bf16.mxu0 0
  %173 = vmatpush1.bf16.msra.mxu0 0
  %174 = vmatprep.subr.bf16.mxu0 0
  %175 = vmatpush1.bf16.msra.mxu0 0
  %176 = vmatprep.subr.bf16.mxu0 0
  %177 = vmatpush1.bf16.msra.mxu0 0
  %178 = vmatprep.subr.bf16.mxu0 0
  %179 = vmatpush1.bf16.msra.mxu0 0
  %180 = vmatprep.subr.bf16.mxu0 0
  %181 = vmatpush1.bf16.msra.mxu0 0
  %182 = vmatprep.subr.bf16.mxu0 0
  %183 = vmatpush1.bf16.msra.mxu0 0
  %184 = vmatprep.subr.bf16.mxu0 0
  %185 = vmatpush1.bf16.msra.mxu0 0
  %186 = vmatprep.subr.bf16.mxu0 0
  %187 = vmatpush1.bf16.msra.mxu0 0
  %188 = vmatprep.subr.bf16.mxu0 0
  %189 = vmatpush1.bf16.msra.mxu0 0
  %190 = vmatprep.subr.bf16.mxu0 0
  %191 = vmatpush1.bf16.msra.mxu0 0
  %192 = vmatprep.subr.bf16.mxu0 0
  %193 = vmatpush1.bf16.msra.mxu0 0
  %194 = vmatprep.mubr.bf16.mxu0 0
  %195 = vmatmul.mubr.bf16.gmra.mrb[0].mxu0 %v135
  %v196 = vpop.f32.mrb[0].mxu0
  %v197 = vadd.f32 0.0, %v196
  %v198 = vpop.f32.mrb[0].mxu0
  %v199 = vpop.f32.mrb[0].mxu0
  %v200 = vadd.f32 0.0, %v199
  %v201 = vpop.f32.mrb[0].mxu0
  %202 = vmatprep.mubr.bf16.mxu0 0
  %203 = vmatmul.mubr.bf16.gmra.mrb[0].mxu0 %v138
  %v204 = vpop.f32.mrb[0].mxu0
  %v205 = vadd.f32 0.0, %v204
  %v206 = vpop.f32.mrb[0].mxu0
  %v207 = vpop.f32.mrb[0].mxu0
  %v208 = vadd.f32 0.0, %v207
  %v209 = vpop.f32.mrb[0].mxu0
  %210 = vmatprep.mubr.bf16.mxu0 0
  %211 = vmatmul.mubr.bf16.gmra.mrb[0].mxu0 %v141
  %v212 = vpop.f32.mrb[0].mxu0
  %v213 = vadd.f32 0.0, %v212
  %v214 = vpop.f32.mrb[0].mxu0
  %v215 = vpop.f32.mrb[0].mxu0
  %v216 = vadd.f32 0.0, %v215
  %v217 = vpop.f32.mrb[0].mxu0
  %218 = vmatprep.mubr.bf16.mxu0 0
  %219 = vmatmul.mubr.bf16.gmra.mrb[0].mxu0 %v144
  %v220 = vpop.f32.mrb[0].mxu0
  %v221 = vadd.f32 0.0, %v220
  %v222 = vpop.f32.mrb[0].mxu0
  %v223 = vpop.f32.mrb[0].mxu0
  %v224 = vadd.f32 0.0, %v223
  %v225 = vpop.f32.mrb[0].mxu0
  %226 = vmatprep.mubr.bf16.mxu0 0
  %227 = vmatmul.mubr.bf16.gmra.mrb[0].mxu0 %v147
  %v228 = vpop.f32.mrb[0].mxu0
  %v229 = vadd.f32 0.0, %v228
  %v230 = vpop.f32.mrb[0].mxu0
  %v231 = vpop.f32.mrb[0].mxu0
  %v232 = vadd.f32 0.0, %v231
  %v233 = vpop.f32.mrb[0].mxu0
  %234 = vmatprep.mubr.bf16.mxu0 0
  %235 = vmatmul.mubr.bf16.gmra.mrb[0].mxu0 %v150
  %v236 = vpop.f32.mrb[0].mxu0
  %v237 = vadd.f32 0.0, %v236
  %v238 = vpop.f32.mrb[0].mxu0
  %v239 = vpop.f32.mrb[0].mxu0
  %v240 = vadd.f32 0.0, %v239
  %v241 = vpop.f32.mrb[0].mxu0
  %242 = vmatprep.mubr.bf16.mxu0 0
  %243 = vmatmul.mubr.bf16.gmra.mrb[0].mxu0 %v153
  %v244 = vpop.f32.mrb[0].mxu0
  %v245 = vadd.f32 0.0, %v244
  %v246 = vpop.f32.mrb[0].mxu0
  %v247 = vpop.f32.mrb[0].mxu0
  %v248 = vadd.f32 0.0, %v247
  %v249 = vpop.f32.mrb[0].mxu0
  %250 = vmatprep.mubr.bf16.mxu0 0
  %251 = vmatmul.mubr.bf16.gmra.mrb[0].mxu0 %v156
  %v252 = vpop.f32.mrb[0].mxu0
  %v253 = vadd.f32 0.0, %v252
  %v254 = vpop.f32.mrb[0].mxu0
  %v255 = vpop.f32.mrb[0].mxu0
  %v256 = vadd.f32 0.0, %v255
  %v257 = vpop.f32.mrb[0].mxu0
  %258 = vdwg.mxu0
  %v259 = vpack.c.bf16 %v200, %v197
  %v260 = vpack.c.bf16 %v208, %v205
  %v261 = vpack.c.bf16 %v216, %v213
  %v262 = vpack.c.bf16 %v224, %v221
  %v263 = vpack.c.bf16 %v232, %v229
  %v264 = vpack.c.bf16 %v240, %v237
  %v265 = vpack.c.bf16 %v248, %v245
  %v266 = vpack.c.bf16 %v256, %v253
  %v275 = vunpack.c.l.b16 %v259
  %v276 = vunpack.c.h.b16 %v259
  %v277 = vunpack.c.l.b16 %v260
  %v278 = vunpack.c.h.b16 %v260
  %v279 = vunpack.c.l.b16 %v261
  %v280 = vunpack.c.h.b16 %v261
  %v281 = vunpack.c.l.b16 %v262
  %v282 = vunpack.c.h.b16 %v262
  %v283 = vunpack.c.l.b16 %v263
  %v284 = vunpack.c.h.b16 %v263
  %v285 = vunpack.c.l.b16 %v264
  %v286 = vunpack.c.h.b16 %v264
  %v287 = vunpack.c.l.b16 %v265
  %v288 = vunpack.c.h.b16 %v265
  %v289 = vunpack.c.l.b16 %v266
  %v290 = vunpack.c.h.b16 %v266
  %v291 = vpack.c.b16 %v275, %v275
  %v292 = vpack.c.b16 %v276, %v276
  %v293 = vpack.c.b16 %v277, %v277
  %v294 = vpack.c.b16 %v278, %v278
  %v295 = vpack.c.b16 %v279, %v279
  %v296 = vpack.c.b16 %v280, %v280
  %v297 = vpack.c.b16 %v281, %v281
  %v298 = vpack.c.b16 %v282, %v282
  %v299 = vpack.c.b16 %v283, %v283
  %v300 = vpack.c.b16 %v284, %v284
  %v301 = vpack.c.b16 %v285, %v285
  %v302 = vpack.c.b16 %v286, %v286
  %v303 = vpack.c.b16 %v287, %v287
  %v304 = vpack.c.b16 %v288, %v288
  %v305 = vpack.c.b16 %v289, %v289
  %v306 = vpack.c.b16 %v290, %v290
  %323 = vst [vmem:[%s47] sm:$0xf] %v291
  %324 = vst [vmem:[%s47 + $0x4] sm:$0xf] %v292
  %325 = vst [vmem:[%s47 + $0x8] sm:$0xf] %v293
  %326 = vst [vmem:[%s47 + $0xc] sm:$0xf] %v294
  %327 = vst [vmem:[%s47 + $0x10] sm:$0xf] %v295
  %328 = vst [vmem:[%s47 + $0x14] sm:$0xf] %v296
  %329 = vst [vmem:[%s47 + $0x18] sm:$0xf] %v297
  %330 = vst [vmem:[%s47 + $0x1c] sm:$0xf] %v298
  %331 = vst [vmem:[%s47 + $0x20] sm:$0xf] %v299
  %332 = vst [vmem:[%s47 + $0x24] sm:$0xf] %v300
  %333 = vst [vmem:[%s47 + $0x28] sm:$0xf] %v301
  %334 = vst [vmem:[%s47 + $0x2c] sm:$0xf] %v302
  %335 = vst [vmem:[%s47 + $0x30] sm:$0xf] %v303
  %336 = vst [vmem:[%s47 + $0x34] sm:$0xf] %v304
  %337 = vst [vmem:[%s47 + $0x38] sm:$0xf] %v305
  %338 = vst [vmem:[%s47 + $0x3c] sm:$0xf] %v306
  %v339 = vadd.f32 %v197, %v200
  %v340 = vadd.f32 %v339, %v205
  %v341 = vadd.f32 %v340, %v208
  %v342 = vadd.f32 %v341, %v213
  %v343 = vadd.f32 %v342, %v216
  %v344 = vadd.f32 %v343, %v221
  %v345 = vadd.f32 %v344, %v224
  %v346 = vadd.f32 %v345, %v229
  %v347 = vadd.f32 %v346, %v232
  %v348 = vadd.f32 %v347, %v237
  %v349 = vadd.f32 %v348, %v240
  %v350 = vadd.f32 %v349, %v245
  %v351 = vadd.f32 %v350, %v248
  %v352 = vadd.f32 %v351, %v253
  %v353 = vadd.f32 %v352, %v256
  %v354 = vrot.slane %v353, 4
  %v355 = vadd.f32 %v353, %v354
  %v356 = vrot.slane %v355, 2
  %v357 = vadd.f32 %v355, %v356
  %v358 = vrot.slane %v357, 1
  %v359 = vadd.f32 %v357, %v358
  %v360 = vadd.f32 %v359, 0.0
  %v361 = vmul.f32 %v197, %v197
  %v362 = vmul.f32 %v200, %v200
  %v363 = vmul.f32 %v205, %v205
  %v364 = vmul.f32 %v208, %v208
  %v365 = vmul.f32 %v213, %v213
  %v366 = vmul.f32 %v216, %v216
  %v367 = vmul.f32 %v221, %v221
  %v368 = vmul.f32 %v224, %v224
  %v369 = vmul.f32 %v229, %v229
  %v370 = vmul.f32 %v232, %v232
  %v371 = vmul.f32 %v237, %v237
  %v372 = vmul.f32 %v240, %v240
  %v373 = vmul.f32 %v245, %v245
  %v374 = vmul.f32 %v248, %v248
  %v375 = vmul.f32 %v253, %v253
  %v376 = vmul.f32 %v256, %v256
  %v377 = vadd.f32 %v361, %v362
  %v378 = vadd.f32 %v377, %v363
  %v379 = vadd.f32 %v378, %v364
  %v380 = vadd.f32 %v379, %v365
  %v381 = vadd.f32 %v380, %v366
  %v382 = vadd.f32 %v381, %v367
  %v383 = vadd.f32 %v382, %v368
  %v384 = vadd.f32 %v383, %v369
  %v385 = vadd.f32 %v384, %v370
  %v386 = vadd.f32 %v385, %v371
  %v387 = vadd.f32 %v386, %v372
  %v388 = vadd.f32 %v387, %v373
  %v389 = vadd.f32 %v388, %v374
  %v390 = vadd.f32 %v389, %v375
  %v391 = vadd.f32 %v390, %v376
  %v392 = vrot.slane %v391, 4
  %v393 = vadd.f32 %v391, %v392
  %v394 = vrot.slane %v393, 2
  %v395 = vadd.f32 %v393, %v394
  %v396 = vrot.slane %v395, 1
  %v397 = vadd.f32 %v395, %v396
  %v398 = vadd.f32 %v397, 0.0
  %v399 = vld [vmem:[%s3] sm:$0x1]
  %v400 = vadd.f32 %v399, %v360
  %401 = vst [vmem:[%s3] sm:$0x1] %v400
  %v402 = vld [vmem:[%s4] sm:$0x1]
  %v403 = vadd.f32 %v402, %v398
  %404 = vst [vmem:[%s4] sm:$0x1] %v403
  %s405 = sadd.s32 0, 0
  %s406 = smul.u32 16, %s405
  %p407 = scmp.lt.s32.totalorder %s406, 15
  %s408 = scalar_select %p407, %s406, 15
  %s409 = smul.addr %s408, 4
  %s410 = scalar_lea.vmem %s2, %s409
  // Predicated region
  $region14: #{downsample_block.2} parent=0 // pred_check
    _
  $region15: #{downsample_block.2} parent=0 // pred_check_branch
    %412 = sbr.rel (0) target = $region17
  $region16: #{downsample_block.2} parent=0 // pred_region
    %s413 = sadd.s32 0, 0
    %s414 = smul.u32 16, %s413
  $region17: #{downsample_block.2} parent=0 // pred_fallthru
    _
  // Predicated region
  $region18: #{downsample_block.2} parent=0 // pred_check
    _
  $region19: #{downsample_block.2} parent=0 // pred_check_branch
    %416 = sbr.rel (0) target = $region21
  $region20: #{downsample_block.2} parent=0 // pred_region
    _
  $region21: #{downsample_block.2} parent=0 // pred_fallthru
    _
  // Predicated region
  $region22: #{downsample_block.2} parent=0 // pred_check
    _
  $region23: #{downsample_block.2} parent=0 // pred_check_branch
    %418 = sbr.rel (0) target = $region25
  $region24: #{downsample_block.2} parent=0 // pred_region
    _
  $region25: #{downsample_block.2} parent=0 // pred_fallthru
    _
  // Predicated region
  $region26: #{downsample_block.2} parent=0 // pred_check
    _
  $region27: #{downsample_block.2} parent=0 // pred_check_branch
    %420 = sbr.rel (0) target = $region29
  $region28: #{downsample_block.2} parent=0 // pred_region
    %s421 = sadd.s32 0, 0
    %s422 = smul.u32 16, %s421
    %p423 = scmp.lt.s32.totalorder %s422, 15
    %s424 = scalar_select %p423, %s422, 15
    %s425 = smul.addr %s424, 4
    %s426 = scalar_lea.vmem %s2, %s425
  $region29: #{downsample_block.2} parent=0 // pred_fallthru
    _
  // Predicated region
  $region30: #{downsample_block.2} parent=0 // pred_check
    _
  $region31: #{downsample_block.2} parent=0 // pred_check_branch
    %428 = sbr.rel (0) target = $region33
  $region32: #{downsample_block.2} parent=0 // pred_region
    _
  $region33: #{downsample_block.2} parent=0 // pred_fallthru
    _
  // Predicated region
  $region34: #{downsample_block.2} parent=0 // pred_check
    _
  $region35: #{downsample_block.2} parent=0 // pred_check_branch
    %430 = sbr.rel (0) target = $region37
  $region36: #{downsample_block.2} parent=0 // pred_region
    _
  $region37: #{downsample_block.2} parent=0 // pred_fallthru
    _

</llo_original>
